<compile_context>
chip_gen: v7x
topology: tpu7x:2x2x1
jax: 0.10.0
libtpu: 0.0.40
codegen_flags: <defaults>
</compile_context>

<pallas_src>
import functools

import numpy as np
import jax
import jax.numpy as jnp
from jax.experimental import pallas as pl
from jax.experimental.pallas import tpu as pltpu


# Tap order t = kh*3 + kw  (kh = dh + 1, kw = dw + 1).
# Must match the weight re-layout in single_layer_forward and the masks below.
_TAPS = tuple((dh, dw) for dh in (-1, 0, 1) for dw in (-1, 0, 1))


def _make_tap_masks(H, W):
    """(9, 1, H*W) float32 validity masks per 3x3 tap (emulates zero padding=1)."""
    hh, ww = np.meshgrid(np.arange(H), np.arange(W), indexing="ij")
    masks = np.stack(
        [((hh + dh >= 0) & (hh + dh < H) & (ww + dw >= 0) & (ww + dw < W)).reshape(H * W)
         for (dh, dw) in _TAPS],
        axis=0,
    )
    return masks.astype(np.float32)[:, None, :]


def _single_layer_kernel(x_ref, w_ref, mask_ref, out_ref, *, W):
    """One batch block per grid step.

    x_ref   : (NB, Cin, H*W)        f32   input, spatial flattened on the lane axis
    w_ref   : (Cout, 9*Cin)         bf16  conv weights, columns ordered (tap, cin)
    mask_ref: (9, 1, H*W)           f32   per-tap zero-padding masks
    out_ref : (NB, Cin+Cout, H*W)   f32   [x passthrough | conv3x3(relu(x))]
    """
    NB, Cin, HW = x_ref.shape
    Cout = w_ref.shape[0]

    x = x_ref[...]                          # (NB, Cin, HW) f32
    out_ref[:, :Cin, :] = x                 # passthrough: the original, un-ReLU'd x
    xr = jnp.maximum(x, 0.0)                # ReLU in f32

    # 9 shifted copies of relu(x): static roll on the flattened lane axis + halo mask.
    shifted = []
    for t, (dh, dw) in enumerate(_TAPS):
        d = dh * W + dw                     # flattened spatial offset of this tap
        s = xr if d == 0 else jnp.roll(xr, -d, axis=-1)   # s[..., p] = xr[..., p + d]
        if d != 0:
            s = s * mask_ref[t]             # (1, HW) broadcast: zeroes out-of-bounds taps
        shifted.append(s)

    # im2col: rows = (tap, cin), cols = (batch, spatial)  ->  (9*Cin, NB*HW)
    im2col = jnp.concatenate(
        [jnp.concatenate([shifted[t][n] for t in range(9)], axis=0) for n in range(NB)],
        axis=1,
    ).astype(w_ref.dtype)

    # Single lane-dense MXU matmul: (Cout, 9*Cin) @ (9*Cin, NB*HW), f32 accumulation.
    conv = jnp.dot(w_ref[...], im2col, preferred_element_type=jnp.float32)

    for n in range(NB):
        out_ref[n, Cin:, :] = conv[:, n * HW:(n + 1) * HW].astype(out_ref.dtype)


@functools.partial(jax.jit, static_argnames=("use_dropout", "batch_block", "mxu_dtype"))
def single_layer_forward(x_nchw, weight_oihw, use_dropout=False,
                         batch_block=None, mxu_dtype=jnp.bfloat16):
    """x_nchw: (N, Cin, H, W) f32; weight_oihw: (Cout, Cin, 3, 3) f32.

    Returns (N, Cin+Cout, H, W), matching torch.cat((x, conv1(relu(x))), 1).
    """
    # TODO(synk): dropout (p=0.2) training-mode RNG masking not implemented; module is
    # run with eval / use_dropout=False semantics (identity).
    del use_dropout

    N, Cin, H, W = x_nchw.shape
    Cout = weight_oihw.shape[0]
    HW = H * W

    nb = N if batch_block is None else batch_block
    assert N % nb == 0, "batch_block must divide N"

    # Free metadata reshape only (no pad, no transpose of the activations).
    x2 = x_nchw.reshape(N, Cin, HW)
    # Tiny weight re-layout: (Cout, Cin, 3, 3) -> (Cout, 9*Cin), column = tap*Cin + cin.
    w2 = jnp.transpose(weight_oihw, (0, 2, 3, 1)).reshape(Cout, 9 * Cin).astype(mxu_dtype)
    masks = jnp.asarray(_make_tap_masks(H, W))          # (9, 1, HW) f32 constant

    kernel = functools.partial(_single_layer_kernel, W=W)

    out2 = pl.pallas_call(
        kernel,
        out_shape=jax.ShapeDtypeStruct((N, Cin + Cout, HW), x_nchw.dtype),
        grid_spec=pltpu.PrefetchScalarGridSpec(
            num_scalar_prefetch=0,
            grid=(N // nb,),
            in_specs=[
                pl.BlockSpec((nb, Cin, HW), lambda i: (i, 0, 0)),
                pl.BlockSpec((Cout, 9 * Cin), lambda i: (0, 0)),
                pl.BlockSpec((9, 1, HW), lambda i: (0, 0, 0)),
            ],
            out_specs=pl.BlockSpec((nb, Cin + Cout, HW), lambda i: (i, 0, 0)),
        ),
        compiler_params=pltpu.CompilerParams(
            dimension_semantics=("parallel",)),
    )(x2, w2, masks)

    return out2.reshape(N, Cin + Cout, H, W)


def _reference_forward(x_nchw, weight_oihw):
    """Pure-JAX reference (mirrors the PyTorch forward) in full f32."""
    xr = jnp.maximum(x_nchw, 0.0)
    conv = jax.lax.conv_general_dilated(
        xr, weight_oihw,
        window_strides=(1, 1), padding=((1, 1), (1, 1)),
        dimension_numbers=("NCHW", "OIHW", "NCHW"),
        precision=jax.lax.Precision.HIGHEST)
    return jnp.concatenate([x_nchw, conv], axis=1)


if __name__ == "__main__":
    # Small, module-consistent shapes: batch=2, n_channels=4, growth_rate=8, spatial=16.
    N, Cin, H, W = 2, 4, 16, 16
    growth_rate = 8

    key = jax.random.PRNGKey(0)
    kx, kw = jax.random.split(key)
    x = jax.random.normal(kx, (N, Cin, H, W), dtype=jnp.float32)
    # Deterministic synthetic conv1 weights (Conv2d(n_channels, growth_rate, 3, bias=False)).
    fan_in = Cin * 3 * 3
    weight = jax.random.normal(kw, (growth_rate, Cin, 3, 3), dtype=jnp.float32) / jnp.sqrt(fan_in)

    out = single_layer_forward(x, weight, use_dropout=False)
    out = jax.block_until_ready(out)

    ref = _reference_forward(x, weight)
    assert out.shape == (N, Cin + growth_rate, H, W)
    # bf16 MXU operands with f32 accumulation: tolerance loosened accordingly
    # (bug-level errors would be O(0.5), far above this threshold).
    assert jnp.allclose(out, ref, atol=5e-2, rtol=5e-2), "mismatch vs reference"

    print("KERNEL_OK")
</pallas_src>

<mosaic_0001>
module attributes {stable_mosaic.version = 11 : i64} {
  func.func @_single_layer_kernel(%arg0: i32, %arg1: memref<2x4x256xf32, #tpu.memory_space<vmem>>, %arg2: memref<8x36xbf16, #tpu.memory_space<vmem>>, %arg3: memref<9x1x256xf32, #tpu.memory_space<vmem>>, %arg4: memref<2x12x256xf32, #tpu.memory_space<vmem>>) attributes {dimension_semantics = [#tpu.dimension_semantics<parallel>], iteration_bounds = array<i64: 1>, scalar_prefetch = 0 : i64, scratch_operands = 0 : i64, tpu.core_type = #tpu.core_type<tc>, window_params = [{transform_indices = @transform_0, window_bounds = array<i64: 2, 4, 256>}, {pipeline_mode = #tpu.pipeline_mode<synchronous>, transform_indices = @transform_1, window_bounds = array<i64: 8, 36>}, {pipeline_mode = #tpu.pipeline_mode<synchronous>, transform_indices = @transform_2, window_bounds = array<i64: 9, 1, 256>}, {transform_indices = @transform_3, window_bounds = array<i64: 2, 12, 256>}]} {
    %c0 = arith.constant 0 : index
    %c0_0 = arith.constant 0 : index
    %c0_1 = arith.constant 0 : index
    %0 = vector.load %arg1[%c0, %c0_0, %c0_1] : memref<2x4x256xf32, #tpu.memory_space<vmem>>, vector<2x4x256xf32>
    %c0_2 = arith.constant 0 : index
    %c0_3 = arith.constant 0 : index
    %c0_4 = arith.constant 0 : index
    %1 = vector.load %arg4[%c0_2, %c0_3, %c0_4] : memref<2x12x256xf32, #tpu.memory_space<vmem>>, vector<2x4x256xf32>
    tpu.vector_store %arg4[%c0_2, %c0_3, %c0_4], %0 {strides = array<i32>} : memref<2x12x256xf32, #tpu.memory_space<vmem>>, vector<2x4x256xf32>,
    %cst = arith.constant 0.000000e+00 : f32
    %2 = vector.broadcast %cst : f32 to vector<2x4x256xf32>
    %3 = arith.maximumf %0, %2 : vector<2x4x256xf32>
    %4 = vector.extract_strided_slice %3 {offsets = [0, 0, 239], sizes = [2, 4, 17], strides = [1, 1, 1]} : vector<2x4x256xf32> to vector<2x4x17xf32>
    %5 = vector.extract_strided_slice %3 {offsets = [0, 0, 0], sizes = [2, 4, 239], strides = [1, 1, 1]} : vector<2x4x256xf32> to vector<2x4x239xf32>
    %6 = tpu.concatenate %4, %5 in 2 : vector<2x4x17xf32>, vector<2x4x239xf32> -> vector<2x4x256xf32>
    %c0_5 = arith.constant 0 : index
    %c0_6 = arith.constant 0 : index
    %c0_7 = arith.constant 0 : index
    %7 = vector.load %arg3[%c0_5, %c0_6, %c0_7] : memref<9x1x256xf32, #tpu.memory_space<vmem>>, vector<1x1x256xf32>
    %8 = vector.shape_cast %7 : vector<1x1x256xf32> to vector<1x256xf32>
    %9 = vector.shape_cast %8 : vector<1x256xf32> to vector<1x1x256xf32>
    %10 = vector.broadcast %9 : vector<1x1x256xf32> to vector<2x4x256xf32>
    %11 = arith.mulf %6, %10 : vector<2x4x256xf32>
    %12 = vector.extract_strided_slice %3 {offsets = [0, 0, 240], sizes = [2, 4, 16], strides = [1, 1, 1]} : vector<2x4x256xf32> to vector<2x4x16xf32>
    %13 = vector.extract_strided_slice %3 {offsets = [0, 0, 0], sizes = [2, 4, 240], strides = [1, 1, 1]} : vector<2x4x256xf32> to vector<2x4x240xf32>
    %14 = tpu.concatenate %12, %13 in 2 : vector<2x4x16xf32>, vector<2x4x240xf32> -> vector<2x4x256xf32>
    %c1 = arith.constant 1 : index
    %c0_8 = arith.constant 0 : index
    %c0_9 = arith.constant 0 : index
    %15 = vector.load %arg3[%c1, %c0_8, %c0_9] : memref<9x1x256xf32, #tpu.memory_space<vmem>>, vector<1x1x256xf32>
    %16 = vector.shape_cast %15 : vector<1x1x256xf32> to vector<1x256xf32>
    %17 = vector.shape_cast %16 : vector<1x256xf32> to vector<1x1x256xf32>
    %18 = vector.broadcast %17 : vector<1x1x256xf32> to vector<2x4x256xf32>
    %19 = arith.mulf %14, %18 : vector<2x4x256xf32>
    %20 = vector.extract_strided_slice %3 {offsets = [0, 0, 241], sizes = [2, 4, 15], strides = [1, 1, 1]} : vector<2x4x256xf32> to vector<2x4x15xf32>
    %21 = vector.extract_strided_slice %3 {offsets = [0, 0, 0], sizes = [2, 4, 241], strides = [1, 1, 1]} : vector<2x4x256xf32> to vector<2x4x241xf32>
    %22 = tpu.concatenate %20, %21 in 2 : vector<2x4x15xf32>, vector<2x4x241xf32> -> vector<2x4x256xf32>
    %c2 = arith.constant 2 : index
    %c0_10 = arith.constant 0 : index
    %c0_11 = arith.constant 0 : index
    %23 = vector.load %arg3[%c2, %c0_10, %c0_11] : memref<9x1x256xf32, #tpu.memory_space<vmem>>, vector<1x1x256xf32>
    %24 = vector.shape_cast %23 : vector<1x1x256xf32> to vector<1x256xf32>
    %25 = vector.shape_cast %24 : vector<1x256xf32> to vector<1x1x256xf32>
    %26 = vector.broadcast %25 : vector<1x1x256xf32> to vector<2x4x256xf32>
    %27 = arith.mulf %22, %26 : vector<2x4x256xf32>
    %28 = vector.extract_strided_slice %3 {offsets = [0, 0, 255], sizes = [2, 4, 1], strides = [1, 1, 1]} : vector<2x4x256xf32> to vector<2x4x1xf32>
    %29 = vector.extract_strided_slice %3 {offsets = [0, 0, 0], sizes = [2, 4, 255], strides = [1, 1, 1]} : vector<2x4x256xf32> to vector<2x4x255xf32>
    %30 = tpu.concatenate %28, %29 in 2 : vector<2x4x1xf32>, vector<2x4x255xf32> -> vector<2x4x256xf32>
    %c3 = arith.constant 3 : index
    %c0_12 = arith.constant 0 : index
    %c0_13 = arith.constant 0 : index
    %31 = vector.load %arg3[%c3, %c0_12, %c0_13] : memref<9x1x256xf32, #tpu.memory_space<vmem>>, vector<1x1x256xf32>
    %32 = vector.shape_cast %31 : vector<1x1x256xf32> to vector<1x256xf32>
    %33 = vector.shape_cast %32 : vector<1x256xf32> to vector<1x1x256xf32>
    %34 = vector.broadcast %33 : vector<1x1x256xf32> to vector<2x4x256xf32>
    %35 = arith.mulf %30, %34 : vector<2x4x256xf32>
    %36 = vector.extract_strided_slice %3 {offsets = [0, 0, 1], sizes = [2, 4, 255], strides = [1, 1, 1]} : vector<2x4x256xf32> to vector<2x4x255xf32>
    %37 = vector.extract_strided_slice %3 {offsets = [0, 0, 0], sizes = [2, 4, 1], strides = [1, 1, 1]} : vector<2x4x256xf32> to vector<2x4x1xf32>
    %38 = tpu.concatenate %36, %37 in 2 : vector<2x4x255xf32>, vector<2x4x1xf32> -> vector<2x4x256xf32>
    %c5 = arith.constant 5 : index
    %c0_14 = arith.constant 0 : index
    %c0_15 = arith.constant 0 : index
    %39 = vector.load %arg3[%c5, %c0_14, %c0_15] : memref<9x1x256xf32, #tpu.memory_space<vmem>>, vector<1x1x256xf32>
    %40 = vector.shape_cast %39 : vector<1x1x256xf32> to vector<1x256xf32>
    %41 = vector.shape_cast %40 : vector<1x256xf32> to vector<1x1x256xf32>
    %42 = vector.broadcast %41 : vector<1x1x256xf32> to vector<2x4x256xf32>
    %43 = arith.mulf %38, %42 : vector<2x4x256xf32>
    %44 = vector.extract_strided_slice %3 {offsets = [0, 0, 15], sizes = [2, 4, 241], strides = [1, 1, 1]} : vector<2x4x256xf32> to vector<2x4x241xf32>
    %45 = vector.extract_strided_slice %3 {offsets = [0, 0, 0], sizes = [2, 4, 15], strides = [1, 1, 1]} : vector<2x4x256xf32> to vector<2x4x15xf32>
    %46 = tpu.concatenate %44, %45 in 2 : vector<2x4x241xf32>, vector<2x4x15xf32> -> vector<2x4x256xf32>
    %c6 = arith.constant 6 : index
    %c0_16 = arith.constant 0 : index
    %c0_17 = arith.constant 0 : index
    %47 = vector.load %arg3[%c6, %c0_16, %c0_17] : memref<9x1x256xf32, #tpu.memory_space<vmem>>, vector<1x1x256xf32>
    %48 = vector.shape_cast %47 : vector<1x1x256xf32> to vector<1x256xf32>
    %49 = vector.shape_cast %48 : vector<1x256xf32> to vector<1x1x256xf32>
    %50 = vector.broadcast %49 : vector<1x1x256xf32> to vector<2x4x256xf32>
    %51 = arith.mulf %46, %50 : vector<2x4x256xf32>
    %52 = vector.extract_strided_slice %3 {offsets = [0, 0, 16], sizes = [2, 4, 240], strides = [1, 1, 1]} : vector<2x4x256xf32> to vector<2x4x240xf32>
    %53 = vector.extract_strided_slice %3 {offsets = [0, 0, 0], sizes = [2, 4, 16], strides = [1, 1, 1]} : vector<2x4x256xf32> to vector<2x4x16xf32>
    %54 = tpu.concatenate %52, %53 in 2 : vector<2x4x240xf32>, vector<2x4x16xf32> -> vector<2x4x256xf32>
    %c7 = arith.constant 7 : index
    %c0_18 = arith.constant 0 : index
    %c0_19 = arith.constant 0 : index
    %55 = vector.load %arg3[%c7, %c0_18, %c0_19] : memref<9x1x256xf32, #tpu.memory_space<vmem>>, vector<1x1x256xf32>
    %56 = vector.shape_cast %55 : vector<1x1x256xf32> to vector<1x256xf32>
    %57 = vector.shape_cast %56 : vector<1x256xf32> to vector<1x1x256xf32>
    %58 = vector.broadcast %57 : vector<1x1x256xf32> to vector<2x4x256xf32>
    %59 = arith.mulf %54, %58 : vector<2x4x256xf32>
    %60 = vector.extract_strided_slice %3 {offsets = [0, 0, 17], sizes = [2, 4, 239], strides = [1, 1, 1]} : vector<2x4x256xf32> to vector<2x4x239xf32>
    %61 = vector.extract_strided_slice %3 {offsets = [0, 0, 0], sizes = [2, 4, 17], strides = [1, 1, 1]} : vector<2x4x256xf32> to vector<2x4x17xf32>
    %62 = tpu.concatenate %60, %61 in 2 : vector<2x4x239xf32>, vector<2x4x17xf32> -> vector<2x4x256xf32>
    %c8 = arith.constant 8 : index
    %c0_20 = arith.constant 0 : index
    %c0_21 = arith.constant 0 : index
    %63 = vector.load %arg3[%c8, %c0_20, %c0_21] : memref<9x1x256xf32, #tpu.memory_space<vmem>>, vector<1x1x256xf32>
    %64 = vector.shape_cast %63 : vector<1x1x256xf32> to vector<1x256xf32>
    %65 = vector.shape_cast %64 : vector<1x256xf32> to vector<1x1x256xf32>
    %66 = vector.broadcast %65 : vector<1x1x256xf32> to vector<2x4x256xf32>
    %67 = arith.mulf %62, %66 : vector<2x4x256xf32>
    %68 = vector.extract_strided_slice %11 {offsets = [0, 0, 0], sizes = [1, 4, 256], strides = [1, 1, 1]} : vector<2x4x256xf32> to vector<1x4x256xf32>
    %69 = vector.shape_cast %68 : vector<1x4x256xf32> to vector<4x256xf32>
    %70 = vector.extract_strided_slice %19 {offsets = [0, 0, 0], sizes = [1, 4, 256], strides = [1, 1, 1]} : vector<2x4x256xf32> to vector<1x4x256xf32>
    %71 = vector.shape_cast %70 : vector<1x4x256xf32> to vector<4x256xf32>
    %72 = vector.extract_strided_slice %27 {offsets = [0, 0, 0], sizes = [1, 4, 256], strides = [1, 1, 1]} : vector<2x4x256xf32> to vector<1x4x256xf32>
    %73 = vector.shape_cast %72 : vector<1x4x256xf32> to vector<4x256xf32>
    %74 = vector.extract_strided_slice %35 {offsets = [0, 0, 0], sizes = [1, 4, 256], strides = [1, 1, 1]} : vector<2x4x256xf32> to vector<1x4x256xf32>
    %75 = vector.shape_cast %74 : vector<1x4x256xf32> to vector<4x256xf32>
    %76 = vector.extract_strided_slice %3 {offsets = [0, 0, 0], sizes = [1, 4, 256], strides = [1, 1, 1]} : vector<2x4x256xf32> to vector<1x4x256xf32>
    %77 = vector.shape_cast %76 : vector<1x4x256xf32> to vector<4x256xf32>
    %78 = vector.extract_strided_slice %43 {offsets = [0, 0, 0], sizes = [1, 4, 256], strides = [1, 1, 1]} : vector<2x4x256xf32> to vector<1x4x256xf32>
    %79 = vector.shape_cast %78 : vector<1x4x256xf32> to vector<4x256xf32>
    %80 = vector.extract_strided_slice %51 {offsets = [0, 0, 0], sizes = [1, 4, 256], strides = [1, 1, 1]} : vector<2x4x256xf32> to vector<1x4x256xf32>
    %81 = vector.shape_cast %80 : vector<1x4x256xf32> to vector<4x256xf32>
    %82 = vector.extract_strided_slice %59 {offsets = [0, 0, 0], sizes = [1, 4, 256], strides = [1, 1, 1]} : vector<2x4x256xf32> to vector<1x4x256xf32>
    %83 = vector.shape_cast %82 : vector<1x4x256xf32> to vector<4x256xf32>
    %84 = vector.extract_strided_slice %67 {offsets = [0, 0, 0], sizes = [1, 4, 256], strides = [1, 1, 1]} : vector<2x4x256xf32> to vector<1x4x256xf32>
    %85 = vector.shape_cast %84 : vector<1x4x256xf32> to vector<4x256xf32>
    %86 = tpu.concatenate %69, %71, %73, %75, %77, %79, %81, %83, %85 in 0 : vector<4x256xf32>, vector<4x256xf32>, vector<4x256xf32>, vector<4x256xf32>, vector<4x256xf32>, vector<4x256xf32>, vector<4x256xf32>, vector<4x256xf32>, vector<4x256xf32> -> vector<36x256xf32>
    %87 = vector.extract_strided_slice %11 {offsets = [1, 0, 0], sizes = [1, 4, 256], strides = [1, 1, 1]} : vector<2x4x256xf32> to vector<1x4x256xf32>
    %88 = vector.shape_cast %87 : vector<1x4x256xf32> to vector<4x256xf32>
    %89 = vector.extract_strided_slice %19 {offsets = [1, 0, 0], sizes = [1, 4, 256], strides = [1, 1, 1]} : vector<2x4x256xf32> to vector<1x4x256xf32>
    %90 = vector.shape_cast %89 : vector<1x4x256xf32> to vector<4x256xf32>
    %91 = vector.extract_strided_slice %27 {offsets = [1, 0, 0], sizes = [1, 4, 256], strides = [1, 1, 1]} : vector<2x4x256xf32> to vector<1x4x256xf32>
    %92 = vector.shape_cast %91 : vector<1x4x256xf32> to vector<4x256xf32>
    %93 = vector.extract_strided_slice %35 {offsets = [1, 0, 0], sizes = [1, 4, 256], strides = [1, 1, 1]} : vector<2x4x256xf32> to vector<1x4x256xf32>
    %94 = vector.shape_cast %93 : vector<1x4x256xf32> to vector<4x256xf32>
    %95 = vector.extract_strided_slice %3 {offsets = [1, 0, 0], sizes = [1, 4, 256], strides = [1, 1, 1]} : vector<2x4x256xf32> to vector<1x4x256xf32>
    %96 = vector.shape_cast %95 : vector<1x4x256xf32> to vector<4x256xf32>
    %97 = vector.extract_strided_slice %43 {offsets = [1, 0, 0], sizes = [1, 4, 256], strides = [1, 1, 1]} : vector<2x4x256xf32> to vector<1x4x256xf32>
    %98 = vector.shape_cast %97 : vector<1x4x256xf32> to vector<4x256xf32>
    %99 = vector.extract_strided_slice %51 {offsets = [1, 0, 0], sizes = [1, 4, 256], strides = [1, 1, 1]} : vector<2x4x256xf32> to vector<1x4x256xf32>
    %100 = vector.shape_cast %99 : vector<1x4x256xf32> to vector<4x256xf32>
    %101 = vector.extract_strided_slice %59 {offsets = [1, 0, 0], sizes = [1, 4, 256], strides = [1, 1, 1]} : vector<2x4x256xf32> to vector<1x4x256xf32>
    %102 = vector.shape_cast %101 : vector<1x4x256xf32> to vector<4x256xf32>
    %103 = vector.extract_strided_slice %67 {offsets = [1, 0, 0], sizes = [1, 4, 256], strides = [1, 1, 1]} : vector<2x4x256xf32> to vector<1x4x256xf32>
    %104 = vector.shape_cast %103 : vector<1x4x256xf32> to vector<4x256xf32>
    %105 = tpu.concatenate %88, %90, %92, %94, %96, %98, %100, %102, %104 in 0 : vector<4x256xf32>, vector<4x256xf32>, vector<4x256xf32>, vector<4x256xf32>, vector<4x256xf32>, vector<4x256xf32>, vector<4x256xf32>, vector<4x256xf32>, vector<4x256xf32> -> vector<36x256xf32>
    %106 = tpu.concatenate %86, %105 in 1 : vector<36x256xf32>, vector<36x256xf32> -> vector<36x512xf32>
    %107 = arith.truncf %106 : vector<36x512xf32> to vector<36x512xbf16>
    %c0_22 = arith.constant 0 : index
    %c0_23 = arith.constant 0 : index
    %108 = vector.load %arg2[%c0_22, %c0_23] : memref<8x36xbf16, #tpu.memory_space<vmem>>, vector<8x36xbf16>
    %cst_24 = arith.constant dense<0.000000e+00> : vector<8x512xf32>
    %109 = tpu.matmul %108, %107, %cst_24 {dimension_numbers = #tpu.dot_dimension_numbers<[1], [0], [0], [1], [0, 0, 1, 1], [], []>} : vector<8x36xbf16>, vector<36x512xbf16>, vector<8x512xf32> -> vector<8x512xf32>
    %110 = vector.extract_strided_slice %109 {offsets = [0, 0], sizes = [8, 256], strides = [1, 1]} : vector<8x512xf32> to vector<8x256xf32>
    %c0_25 = arith.constant 0 : index
    %c4 = arith.constant 4 : index
    %c0_26 = arith.constant 0 : index
    %111 = vector.load %arg4[%c0_25, %c4, %c0_26] : memref<2x12x256xf32, #tpu.memory_space<vmem>>, vector<1x8x256xf32>
    %112 = vector.shape_cast %111 : vector<1x8x256xf32> to vector<8x256xf32>
    %113 = vector.shape_cast %110 : vector<8x256xf32> to vector<1x8x256xf32>
    tpu.vector_store %arg4[%c0_25, %c4, %c0_26], %113 {strides = array<i32>} : memref<2x12x256xf32, #tpu.memory_space<vmem>>, vector<1x8x256xf32>,
    %114 = vector.extract_strided_slice %109 {offsets = [0, 256], sizes = [8, 256], strides = [1, 1]} : vector<8x512xf32> to vector<8x256xf32>
    %c1_27 = arith.constant 1 : index
    %c4_28 = arith.constant 4 : index
    %c0_29 = arith.constant 0 : index
    %115 = vector.load %arg4[%c1_27, %c4_28, %c0_29] : memref<2x12x256xf32, #tpu.memory_space<vmem>>, vector<1x8x256xf32>
    %116 = vector.shape_cast %115 : vector<1x8x256xf32> to vector<8x256xf32>
    %117 = vector.shape_cast %114 : vector<8x256xf32> to vector<1x8x256xf32>
    tpu.vector_store %arg4[%c1_27, %c4_28, %c0_29], %117 {strides = array<i32>} : memref<2x12x256xf32, #tpu.memory_space<vmem>>, vector<1x8x256xf32>,
    return
  }
  func.func @transform_0(%arg0: i32) -> (i32, i32, i32) {
    %c0_i32 = arith.constant 0 : i32
    %c0_i32_0 = arith.constant 0 : i32
    %c0_i32_1 = arith.constant 0 : i32
    return %arg0, %c0_i32, %c0_i32_0 : i32, i32, i32
  }
  func.func @transform_1(%arg0: i32) -> (i32, i32) {
    %c0_i32 = arith.constant 0 : i32
    %c0_i32_0 = arith.constant 0 : i32
    %c0_i32_1 = arith.constant 0 : i32
    return %c0_i32, %c0_i32_0 : i32, i32
  }
  func.func @transform_2(%arg0: i32) -> (i32, i32, i32) {
    %c0_i32 = arith.constant 0 : i32
    %c0_i32_0 = arith.constant 0 : i32
    %c0_i32_1 = arith.constant 0 : i32
    %c0_i32_2 = arith.constant 0 : i32
    return %c0_i32, %c0_i32_0, %c0_i32_1 : i32, i32, i32
  }
  func.func @transform_3(%arg0: i32) -> (i32, i32, i32) {
    %c0_i32 = arith.constant 0 : i32
    %c0_i32_0 = arith.constant 0 : i32
    %c0_i32_1 = arith.constant 0 : i32
    return %arg0, %c0_i32, %c0_i32_0 : i32, i32, i32
  }
}

</mosaic_0001>

<llo_original>
// kernel: single_layer_forward.1
$region0: #{single_layer_forward.1}
  #allocation0 [shape = 'u32[]', space=smem, size = 0x4, offset = 0x4, fixed_abs, tag = 'smem constant byte address 0x4 - core index']
  #allocation1 [shape = 'u32[144,128]{1,0:T(1,128)}', space=vmem, size = 0x12000, scoped, tag = 'internal scratch']
  %s0 = inlined_call_operand.vmem [shape: f32[2,4,256], index: 0, kind: input, shape index: {}]
  %s1 = inlined_call_operand.vmem [shape: bf16[8,36], index: 1, kind: input, shape index: {}]
  %s2 = inlined_call_operand.vmem [shape: f32[9,1,256], index: 2, kind: input, shape index: {}]
  %s3 = inlined_call_operand.vmem [shape: f32[2,12,256], index: 3, kind: output, shape index: {}]
  %s4 = sld [smem:[#allocation0]]
  $region22: #{single_layer_forward.1} parent=0
    _
  %s6 = ssub.s32 1, %s4
  %s7 = scalar_select 0, %s6, %s4
  // Predicated region
  $region2: #{single_layer_forward.1} parent=0 // pred_check
    _
  $region3: #{single_layer_forward.1} parent=0 // pred_check_branch
    %9 = sbr.rel (0) target = $region5
  $region4: #{single_layer_forward.1} parent=0 // pred_region
    _
  $region5: #{single_layer_forward.1} parent=0 // pred_fallthru
    _
  // Predicated region
  $region6: #{single_layer_forward.1} parent=0 // pred_check
    _
  $region7: #{single_layer_forward.1} parent=0 // pred_check_branch
    %11 = sbr.rel (0) target = $region9
  $region8: #{single_layer_forward.1} parent=0 // pred_region
    _
  $region9: #{single_layer_forward.1} parent=0 // pred_fallthru
    _
  // Predicated region
  $region10: #{single_layer_forward.1} parent=0 // pred_check
    _
  $region11: #{single_layer_forward.1} parent=0 // pred_check_branch
    %13 = sbr.rel (0) target = $region13
  $region12: #{single_layer_forward.1} parent=0 // pred_region
    _
  $region13: #{single_layer_forward.1} parent=0 // pred_fallthru
    _
  %v15 = vld [vmem:[%s0] sm:$0xff]
  %v16 = vld [vmem:[%s0 + $0x8] sm:$0xff]
  %v19 = vcombine.high %v15, %v15
  %v20 = vcombine.high %v16, %v16
  %23 = vst [vmem:[%s3] sm:$0xf] %v15
  %24 = vst [vmem:[%s3 + $0x8] sm:$0xf] %v19
  %25 = vst [vmem:[%s3 + $0x20] sm:$0xf] %v16
  %26 = vst [vmem:[%s3 + $0x28] sm:$0xf] %v20
  %v27 = vmax.f32 %v15, 0.0
  %v28 = vmax.f32 %v16, 0.0
  %v31 = vcombine.high %v27, %v27
  %v32 = vcombine.high %v28, %v28
  %33 = vrot.lane.b32.xlu0 %v31, 17
  %v34 = vpop.permute.xlu0 %33
  %35 = vrot.lane.b32.xlu0 %v32, 17
  %v36 = vpop.permute.xlu0 %35
  %39 = vrot.lane.b32.xlu0 %v27, 17
  %v40 = vpop.permute.xlu0 %39
  %41 = vrot.lane.b32.xlu0 %v28, 17
  %v42 = vpop.permute.xlu0 %41
  %vm43 = vcmask 138240
  %v44 = vsel %vm43, %v40, %v34
  %v45 = vsel %vm43, %v42, %v36
  %v50 = vsel %vm43, %v34, %v40
  %v51 = vsel %vm43, %v36, %v42
  %v52 = vld [vmem:[%s2] sm:$0x3]
  %v54 = vlaneseq
  %v55 = vshrl.u32 %v54, 7
  %v56 = vsub.s32 0, %v55
  %v57 = vrot.slane %v52, %v56
  %v58 = vlaneseq
  %v59 = vshrl.u32 %v58, 7
  %v60 = vsub.s32 1, %v59
  %v61 = vrot.slane %v52, %v60
  %v64 = vmul.f32 %v50, %v57
  %v65 = vmul.f32 %v44, %v61
  %v66 = vmul.f32 %v51, %v57
  %v67 = vmul.f32 %v45, %v61
  %68 = vrot.lane.b32.xlu0 %v31, 16
  %v69 = vpop.permute.xlu0 %68
  %70 = vrot.lane.b32.xlu0 %v32, 16
  %v71 = vpop.permute.xlu0 %70
  %74 = vrot.lane.b32.xlu0 %v27, 16
  %v75 = vpop.permute.xlu0 %74
  %76 = vrot.lane.b32.xlu0 %v28, 16
  %v77 = vpop.permute.xlu0 %76
  %vm78 = vcmask 130048
  %v79 = vsel %vm78, %v75, %v69
  %v80 = vsel %vm78, %v77, %v71
  %v85 = vsel %vm78, %v69, %v75
  %v86 = vsel %vm78, %v71, %v77
  %s87 = scalar_lea.vmem %s2, 2
  %v88 = vld [vmem:[%s87] sm:$0x3]
  %v90 = vlaneseq
  %v91 = vshrl.u32 %v90, 7
  %v92 = vsub.s32 0, %v91
  %v93 = vrot.slane %v88, %v92
  %v94 = vlaneseq
  %v95 = vshrl.u32 %v94, 7
  %v96 = vsub.s32 1, %v95
  %v97 = vrot.slane %v88, %v96
  %v100 = vmul.f32 %v85, %v93
  %v101 = vmul.f32 %v79, %v97
  %v102 = vmul.f32 %v86, %v93
  %v103 = vmul.f32 %v80, %v97
  %104 = vrot.lane.b32.xlu0 %v31, 15
  %v105 = vpop.permute.xlu0 %104
  %106 = vrot.lane.b32.xlu0 %v32, 15
  %v107 = vpop.permute.xlu0 %106
  %110 = vrot.lane.b32.xlu0 %v27, 15
  %v111 = vpop.permute.xlu0 %110
  %112 = vrot.lane.b32.xlu0 %v28, 15
  %v113 = vpop.permute.xlu0 %112
  %vm114 = vcmask 121856
  %v115 = vsel %vm114, %v111, %v105
  %v116 = vsel %vm114, %v113, %v107
  %v121 = vsel %vm114, %v105, %v111
  %v122 = vsel %vm114, %v107, %v113
  %s123 = scalar_lea.vmem %s2, 4
  %v124 = vld [vmem:[%s123] sm:$0x3]
  %v126 = vlaneseq
  %v127 = vshrl.u32 %v126, 7
  %v128 = vsub.s32 0, %v127
  %v129 = vrot.slane %v124, %v128
  %v130 = vlaneseq
  %v131 = vshrl.u32 %v130, 7
  %v132 = vsub.s32 1, %v131
  %v133 = vrot.slane %v124, %v132
  %v136 = vmul.f32 %v121, %v129
  %v137 = vmul.f32 %v115, %v133
  %v138 = vmul.f32 %v122, %v129
  %v139 = vmul.f32 %v116, %v133
  %140 = vrot.lane.b32.xlu0 %v31, 1
  %v141 = vpop.permute.xlu0 %140
  %142 = vrot.lane.b32.xlu0 %v32, 1
  %v143 = vpop.permute.xlu0 %142
  %146 = vrot.lane.b32.xlu0 %v27, 1
  %v147 = vpop.permute.xlu0 %146
  %148 = vrot.lane.b32.xlu0 %v28, 1
  %v149 = vpop.permute.xlu0 %148
  %vm150 = vcmask 7168
  %v151 = vsel %vm150, %v147, %v141
  %v152 = vsel %vm150, %v149, %v143
  %v157 = vsel %vm150, %v141, %v147
  %v158 = vsel %vm150, %v143, %v149
  %s159 = scalar_lea.vmem %s2, 6
  %v160 = vld [vmem:[%s159] sm:$0x3]
  %v162 = vlaneseq
  %v163 = vshrl.u32 %v162, 7
  %v164 = vsub.s32 0, %v163
  %v165 = vrot.slane %v160, %v164
  %v166 = vlaneseq
  %v167 = vshrl.u32 %v166, 7
  %v168 = vsub.s32 1, %v167
  %v169 = vrot.slane %v160, %v168
  %v172 = vmul.f32 %v157, %v165
  %v173 = vmul.f32 %v151, %v169
  %v174 = vmul.f32 %v158, %v165
  %v175 = vmul.f32 %v152, %v169
  %176 = vrot.lane.b32.xlu0 %v27, 127
  %v177 = vpop.permute.xlu0 %176
  %178 = vrot.lane.b32.xlu0 %v31, 127
  %v179 = vpop.permute.xlu0 %178
  %180 = vrot.lane.b32.xlu0 %v28, 127
  %v181 = vpop.permute.xlu0 %180
  %182 = vrot.lane.b32.xlu0 %v32, 127
  %v183 = vpop.permute.xlu0 %182
  %vm184 = vcmask 1039360
  %v185 = vsel %vm184, %v177, %v179
  %v186 = vsel %vm184, %v181, %v183
  %v193 = vsel %vm184, %v179, %v177
  %v194 = vsel %vm184, %v183, %v181
  %s195 = scalar_lea.vmem %s2, 10
  %v196 = vld [vmem:[%s195] sm:$0x3]
  %v198 = vlaneseq
  %v199 = vshrl.u32 %v198, 7
  %v200 = vsub.s32 0, %v199
  %v201 = vrot.slane %v196, %v200
  %v202 = vlaneseq
  %v203 = vshrl.u32 %v202, 7
  %v204 = vsub.s32 1, %v203
  %v205 = vrot.slane %v196, %v204
  %v208 = vmul.f32 %v185, %v201
  %v209 = vmul.f32 %v193, %v205
  %v210 = vmul.f32 %v186, %v201
  %v211 = vmul.f32 %v194, %v205
  %212 = vrot.lane.b32.xlu0 %v27, 113
  %v213 = vpop.permute.xlu0 %212
  %214 = vrot.lane.b32.xlu0 %v31, 113
  %v215 = vpop.permute.xlu0 %214
  %216 = vrot.lane.b32.xlu0 %v28, 113
  %v217 = vpop.permute.xlu0 %216
  %218 = vrot.lane.b32.xlu0 %v32, 113
  %v219 = vpop.permute.xlu0 %218
  %vm220 = vcmask 924672
  %v221 = vsel %vm220, %v213, %v215
  %v222 = vsel %vm220, %v217, %v219
  %v229 = vsel %vm220, %v215, %v213
  %v230 = vsel %vm220, %v219, %v217
  %s231 = scalar_lea.vmem %s2, 12
  %v232 = vld [vmem:[%s231] sm:$0x3]
  %v234 = vlaneseq
  %v235 = vshrl.u32 %v234, 7
  %v236 = vsub.s32 0, %v235
  %v237 = vrot.slane %v232, %v236
  %v238 = vlaneseq
  %v239 = vshrl.u32 %v238, 7
  %v240 = vsub.s32 1, %v239
  %v241 = vrot.slane %v232, %v240
  %v244 = vmul.f32 %v221, %v237
  %v245 = vmul.f32 %v229, %v241
  %v246 = vmul.f32 %v222, %v237
  %v247 = vmul.f32 %v230, %v241
  %248 = vrot.lane.b32.xlu0 %v27, 112
  %v249 = vpop.permute.xlu0 %248
  %250 = vrot.lane.b32.xlu0 %v31, 112
  %v251 = vpop.permute.xlu0 %250
  %252 = vrot.lane.b32.xlu0 %v28, 112
  %v253 = vpop.permute.xlu0 %252
  %254 = vrot.lane.b32.xlu0 %v32, 112
  %v255 = vpop.permute.xlu0 %254
  %vm256 = vcmask 916480
  %v257 = vsel %vm256, %v249, %v251
  %v258 = vsel %vm256, %v253, %v255
  %v265 = vsel %vm256, %v251, %v249
  %v266 = vsel %vm256, %v255, %v253
  %s267 = scalar_lea.vmem %s2, 14
  %v268 = vld [vmem:[%s267] sm:$0x3]
  %v270 = vlaneseq
  %v271 = vshrl.u32 %v270, 7
  %v272 = vsub.s32 0, %v271
  %v273 = vrot.slane %v268, %v272
  %v274 = vlaneseq
  %v275 = vshrl.u32 %v274, 7
  %v276 = vsub.s32 1, %v275
  %v277 = vrot.slane %v268, %v276
  %v280 = vmul.f32 %v257, %v273
  %v281 = vmul.f32 %v265, %v277
  %v282 = vmul.f32 %v258, %v273
  %v283 = vmul.f32 %v266, %v277
  %284 = vrot.lane.b32.xlu0 %v27, 111
  %v285 = vpop.permute.xlu0 %284
  %286 = vrot.lane.b32.xlu0 %v31, 111
  %v287 = vpop.permute.xlu0 %286
  %288 = vrot.lane.b32.xlu0 %v28, 111
  %v289 = vpop.permute.xlu0 %288
  %290 = vrot.lane.b32.xlu0 %v32, 111
  %v291 = vpop.permute.xlu0 %290
  %vm292 = vcmask 908288
  %v293 = vsel %vm292, %v285, %v287
  %v294 = vsel %vm292, %v289, %v291
  %v301 = vsel %vm292, %v287, %v285
  %v302 = vsel %vm292, %v291, %v289
  %s303 = scalar_lea.vmem %s2, 16
  %v304 = vld [vmem:[%s303] sm:$0x3]
  %v306 = vlaneseq
  %v307 = vshrl.u32 %v306, 7
  %v308 = vsub.s32 0, %v307
  %v309 = vrot.slane %v304, %v308
  %v310 = vlaneseq
  %v311 = vshrl.u32 %v310, 7
  %v312 = vsub.s32 1, %v311
  %v313 = vrot.slane %v304, %v312
  %v316 = vmul.f32 %v293, %v309
  %v317 = vmul.f32 %v301, %v313
  %v318 = vmul.f32 %v294, %v309
  %v319 = vmul.f32 %v302, %v313
  %v322 = vrot.slane %v100, 4
  %v323 = vrot.slane %v101, 4
  %v328 = vrot.slane %v172, 4
  %v329 = vrot.slane %v173, 4
  %v335 = vrot.slane %v208, 4
  %v336 = vrot.slane %v209, 4
  %v341 = vrot.slane %v280, 4
  %v342 = vrot.slane %v281, 4
  %vm345 = vcmask 1043456
  %v346 = vsel %vm345, %v64, %v322
  %v347 = vsel %vm345, %v65, %v323
  %v348 = vsel %vm345, %v136, %v328
  %v349 = vsel %vm345, %v137, %v329
  %v350 = vsel %vm345, %v27, %v335
  %v351 = vsel %vm345, %v31, %v336
  %v352 = vsel %vm345, %v244, %v341
  %v353 = vsel %vm345, %v245, %v342
  %v356 = vrot.slane %v102, 4
  %v357 = vrot.slane %v103, 4
  %v362 = vrot.slane %v174, 4
  %v363 = vrot.slane %v175, 4
  %v369 = vrot.slane %v210, 4
  %v370 = vrot.slane %v211, 4
  %v375 = vrot.slane %v282, 4
  %v376 = vrot.slane %v283, 4
  %v379 = vsel %vm345, %v66, %v356
  %v380 = vsel %vm345, %v67, %v357
  %v381 = vsel %vm345, %v138, %v362
  %v382 = vsel %vm345, %v139, %v363
  %v383 = vsel %vm345, %v28, %v369
  %v384 = vsel %vm345, %v32, %v370
  %v385 = vsel %vm345, %v246, %v375
  %v386 = vsel %vm345, %v247, %v376
  %v387 = vpack.c.bf16 %v348, %v346
  %v388 = vpack.c.bf16 %v349, %v347
  %v389 = vpack.c.bf16 %v381, %v379
  %v390 = vpack.c.bf16 %v382, %v380
  %v391 = vpack.c.bf16 %v352, %v350
  %v392 = vpack.c.bf16 %v353, %v351
  %v393 = vpack.c.bf16 %v385, %v383
  %v394 = vpack.c.bf16 %v386, %v384
  %v395 = vpack.c.bf16 %v316, %v316
  %v396 = vpack.c.bf16 %v317, %v317
  %v397 = vpack.c.bf16 %v318, %v318
  %v398 = vpack.c.bf16 %v319, %v319
  %v399 = vld [vmem:[%s1] sm:$0xf]
  %vm400 = vcmask 293888
  %v402 = vsel %vm400, %v399, 0
  %vm404 = vcmask 1041408
  %v406 = vsel %vm404, %v395, 0
  %v409 = vsel %vm404, %v396, 0
  %v412 = vsel %vm404, %v397, 0
  %v415 = vsel %vm404, %v398, 0
  %417 = vmatprep.subr.bf16.mxu0 %v388
  %418 = vmatpush1.bf16.msra.mxu0 %v387
  %419 = vmatprep.subr.bf16.mxu0 %v392
  %420 = vmatpush1.bf16.msra.mxu0 %v391
  %421 = vmatprep.subr.bf16.mxu0 %v409
  %422 = vmatpush1.bf16.msra.mxu0 %v406
  %423 = vmatprep.subr.bf16.mxu0 0
  %424 = vmatpush1.bf16.msra.mxu0 0
  %425 = vmatprep.subr.bf16.mxu0 0
  %426 = vmatpush1.bf16.msra.mxu0 0
  %427 = vmatprep.subr.bf16.mxu0 0
  %428 = vmatpush1.bf16.msra.mxu0 0
  %429 = vmatprep.subr.bf16.mxu0 0
  %430 = vmatpush1.bf16.msra.mxu0 0
  %431 = vmatprep.subr.bf16.mxu0 0
  %432 = vmatpush1.bf16.msra.mxu0 0
  %433 = vmatprep.subr.bf16.mxu0 0
  %434 = vmatpush1.bf16.msra.mxu0 0
  %435 = vmatprep.subr.bf16.mxu0 0
  %436 = vmatpush1.bf16.msra.mxu0 0
  %437 = vmatprep.subr.bf16.mxu0 0
  %438 = vmatpush1.bf16.msra.mxu0 0
  %439 = vmatprep.subr.bf16.mxu0 0
  %440 = vmatpush1.bf16.msra.mxu0 0
  %441 = vmatprep.subr.bf16.mxu0 0
  %442 = vmatpush1.bf16.msra.mxu0 0
  %443 = vmatprep.subr.bf16.mxu0 0
  %444 = vmatpush1.bf16.msra.mxu0 0
  %445 = vmatprep.subr.bf16.mxu0 0
  %446 = vmatpush1.bf16.msra.mxu0 0
  %447 = vmatprep.subr.bf16.mxu0 0
  %448 = vmatpush1.bf16.msra.mxu0 0
  %449 = vmatprep.mubr.bf16.mxu0 0
  %450 = vmatmul.mubr.bf16.gmra.mrb[0].mxu0 %v402
  %v451 = vpop.f32.mrb[0].mxu0
  %v452 = vadd.f32 0.0, %v451
  %v453 = vpop.f32.mrb[0].mxu0
  %v454 = vadd.f32 0.0, %v453
  %v455 = vpop.f32.mrb[0].mxu0
  %v456 = vpop.f32.mrb[0].mxu0
  %457 = vdwg.mxu0
  %458 = vmatprep.subr.bf16.mxu0 %v390
  %459 = vmatpush1.bf16.msra.mxu0 %v389
  %460 = vmatprep.subr.bf16.mxu0 %v394
  %461 = vmatpush1.bf16.msra.mxu0 %v393
  %462 = vmatprep.subr.bf16.mxu0 %v415
  %463 = vmatpush1.bf16.msra.mxu0 %v412
  %464 = vmatprep.subr.bf16.mxu0 0
  %465 = vmatpush1.bf16.msra.mxu0 0
  %466 = vmatprep.subr.bf16.mxu0 0
  %467 = vmatpush1.bf16.msra.mxu0 0
  %468 = vmatprep.subr.bf16.mxu0 0
  %469 = vmatpush1.bf16.msra.mxu0 0
  %470 = vmatprep.subr.bf16.mxu0 0
  %471 = vmatpush1.bf16.msra.mxu0 0
  %472 = vmatprep.subr.bf16.mxu0 0
  %473 = vmatpush1.bf16.msra.mxu0 0
  %474 = vmatprep.subr.bf16.mxu0 0
  %475 = vmatpush1.bf16.msra.mxu0 0
  %476 = vmatprep.subr.bf16.mxu0 0
  %477 = vmatpush1.bf16.msra.mxu0 0
  %478 = vmatprep.subr.bf16.mxu0 0
  %479 = vmatpush1.bf16.msra.mxu0 0
  %480 = vmatprep.subr.bf16.mxu0 0
  %481 = vmatpush1.bf16.msra.mxu0 0
  %482 = vmatprep.subr.bf16.mxu0 0
  %483 = vmatpush1.bf16.msra.mxu0 0
  %484 = vmatprep.subr.bf16.mxu0 0
  %485 = vmatpush1.bf16.msra.mxu0 0
  %486 = vmatprep.subr.bf16.mxu0 0
  %487 = vmatpush1.bf16.msra.mxu0 0
  %488 = vmatprep.subr.bf16.mxu0 0
  %489 = vmatpush1.bf16.msra.mxu0 0
  %490 = vmatprep.mubr.bf16.mxu0 0
  %491 = vmatmul.mubr.bf16.gmra.mrb[0].mxu0 %v402
  %v492 = vpop.f32.mrb[0].mxu0
  %v493 = vadd.f32 0.0, %v492
  %v494 = vpop.f32.mrb[0].mxu0
  %v495 = vadd.f32 0.0, %v494
  %v496 = vpop.f32.mrb[0].mxu0
  %v497 = vpop.f32.mrb[0].mxu0
  %498 = vdwg.mxu0
  %v501 = vrot.slane %v452, 4
  %v502 = vrot.slane %v454, 4
  %505 = vst [vmem:[%s3] sm:$0xf0] %v501
  %506 = vst [vmem:[%s3 + $0x8] sm:$0xf0] %v502
  %507 = vst [vmem:[%s3 + $0x10] sm:$0xf] %v501
  %508 = vst [vmem:[%s3 + $0x18] sm:$0xf] %v502
  %v511 = vrot.slane %v493, 4
  %v512 = vrot.slane %v495, 4
  %s515 = scalar_lea.vmem %s3, 32
  %516 = vst [vmem:[%s515] sm:$0xf0] %v511
  %517 = vst [vmem:[%s515 + $0x8] sm:$0xf0] %v512
  %518 = vst [vmem:[%s515 + $0x10] sm:$0xf] %v511
  %519 = vst [vmem:[%s515 + $0x18] sm:$0xf] %v512
  // Predicated region
  $region14: #{single_layer_forward.1} parent=0 // pred_check
    _
  $region15: #{single_layer_forward.1} parent=0 // pred_check_branch
    %521 = sbr.rel (0) target = $region17
  $region16: #{single_layer_forward.1} parent=0 // pred_region
    _
  $region17: #{single_layer_forward.1} parent=0 // pred_fallthru
    _
  // Predicated region
  $region18: #{single_layer_forward.1} parent=0 // pred_check
    _
  $region19: #{single_layer_forward.1} parent=0 // pred_check_branch
    %523 = sbr.rel (0) target = $region21
  $region20: #{single_layer_forward.1} parent=0 // pred_region
    _
  $region21: #{single_layer_forward.1} parent=0 // pred_fallthru
    _

</llo_original>
